<compile_context>
chip_gen: v7x
topology: tpu7x:2x2x1
jax: 0.10.0
libtpu: 0.0.40
codegen_flags: <defaults>
</compile_context>

<pallas_src>
import jax
import jax.numpy as jnp
from jax.experimental import pallas as pl
from jax.experimental.pallas import tpu as pltpu


def _copy_kernel(x_ref, o_ref):
    # identity copy of the current VMEM tile
    o_ref[...] = x_ref[...]


def _choose_cols(total, sub, max_cols=8192):
    """Largest multiple of 128 dividing `total`, capped at `max_cols`.

    Prefers a choice whose row count (total // cols) is a multiple of the
    sublane pack `sub`, so blocks are fully sublane-aligned (no relayout).
    """
    best = None
    best_aligned = None
    for k in range(min(total, max_cols) // 128, 0, -1):
        c = 128 * k
        if total % c:
            continue
        if best is None:
            best = c
        if best_aligned is None and (total // c) % sub == 0:
            best_aligned = c
        if best is not None and best_aligned is not None:
            break
    return best_aligned if best_aligned is not None else best


def _choose_tile_rows(rows, row_bytes, sub, target_bytes, min_even_bytes):
    """Row-tile: largest sublane-aligned divisor of `rows` within the byte
    budget (no ragged tail), with a preference for an even >=2-step grid so
    both v7x TensorCores get work on medium/large tensors."""
    cap = max(1, min(rows, target_bytes // row_bytes))
    cands = [r for r in range(1, cap + 1)
             if rows % r == 0 and (r % sub == 0 or r == rows)]
    if not cands:
        cands = [r for r in range(1, cap + 1) if rows % r == 0]  # includes 1
    best = max(cands)
    even = [r for r in cands
            if (rows // r) >= 2 and (rows // r) % 2 == 0
            and r * row_bytes >= min_even_bytes]
    if even:
        best = max(even)
    # Pathological case (e.g. rows is a large prime): the best exact divisor
    # may give tiny blocks; fall back to a truncated sublane-aligned tile and
    # let Pallas mask the ragged tail.
    if best * row_bytes < 256 * 1024 and rows > cap:
        trunc = (cap // sub) * sub
        if trunc > best:
            best = trunc
    return max(1, min(best, rows))


def pallas_reshape(x, out_shape, materialize_copy=True):
    """Equivalent of torch.Tensor.view(*out_shape) for a contiguous tensor."""
    total = int(x.size)
    out_total = 1
    for d in out_shape:
        out_total *= int(d)
    assert total == out_total, "view(): shape is incompatible with input size"

    # Perf review #1: a contiguous reshape is metadata-only in XLA; only run
    # the copy kernel when a materialized copy is explicitly requested.
    if not materialize_copy:
        return jnp.reshape(x, out_shape)

    LANE = 128
    if total == 0 or total % LANE != 0:
        # Tiny / non-lane-aligned sizes: a kernel would force masked partial
        # stores for no benefit; reshape is free.
        return jnp.reshape(x, out_shape)

    itemsize = jnp.dtype(x.dtype).itemsize
    sub = 8 * max(1, 4 // itemsize)  # sublane pack: 8 f32 / 16 bf16 / 32 int8

    cols = _choose_cols(total, sub)
    rows = total // cols
    row_bytes = cols * itemsize

    # ~4 MiB blocks (up from 2 MiB): fewer per-step pipeline overheads, still
    # small enough that in+out double-buffering fits every generation's VMEM
    # once the scoped limit is raised explicitly below.
    target_bytes = 4 * 1024 * 1024
    tile_r = _choose_tile_rows(rows, row_bytes, sub, target_bytes,
                               min_even_bytes=512 * 1024)
    block_bytes = tile_r * row_bytes
    grid = (pl.cdiv(rows, tile_r),)

    # in + out, double-buffered, plus headroom; clamp to <=32 MiB, which is
    # safe on v5e/v6e (128 MiB physical) and v7x (64 MiB physical).
    vmem_limit = int(min(max(4 * block_bytes + (2 << 20), 16 << 20), 32 << 20))

    x2d = jnp.reshape(x, (rows, cols))

    y2d = pl.pallas_call(
        _copy_kernel,
        out_shape=jax.ShapeDtypeStruct((rows, cols), x.dtype),
        grid_spec=pltpu.PrefetchScalarGridSpec(
            num_scalar_prefetch=0,
            grid=grid,
            in_specs=[pl.BlockSpec((tile_r, cols), lambda i: (i, 0))],
            out_specs=pl.BlockSpec((tile_r, cols), lambda i: (i, 0)),
        ),
        compiler_params=pltpu.CompilerParams(
            # independent tiles -> both TensorCores on v7x; no-op on v5e/v6e
            dimension_semantics=("parallel",),
            vmem_limit_bytes=vmem_limit,
        ),
        cost_estimate=pl.CostEstimate(
            flops=0,
            transcendentals=0,
            bytes_accessed=2 * total * itemsize,
        ),
    )(x2d)

    # Final shape change is metadata-only.
    return jnp.reshape(y2d, out_shape)


class Reshape:
    """JAX/Pallas counterpart of the PyTorch Reshape module.

    `materialize_copy=False` is the recommended production setting (a
    contiguous reshape is free); the default True exercises the Pallas copy
    kernel so it can be validated / benchmarked.
    """

    def __init__(self, out_shape, materialize_copy=True):
        self.out_shape = tuple(int(d) for d in out_shape)
        self.materialize_copy = materialize_copy

    def __call__(self, x):
        return pallas_reshape(x, self.out_shape, self.materialize_copy)


if __name__ == "__main__":
    key = jax.random.PRNGKey(0)
    # Small NCHW-style input, consistent with a typical autoencoder usage.
    x = jax.random.normal(key, (2, 4, 16, 16), dtype=jnp.float32)

    out_shape = (2, 1024)  # 2*4*16*16 == 2*1024
    mod = Reshape(out_shape)  # exercises the Pallas copy kernel

    y = mod(x)
    jax.block_until_ready(y)

    # correctness check against the pure-JAX reference (bit-exact identity)
    ref = jnp.reshape(x, out_shape)
    assert y.shape == ref.shape
    assert y.dtype == ref.dtype
    assert bool(jnp.all(y == ref))

    # also confirm the metadata-only fast path matches
    y_fast = Reshape(out_shape, materialize_copy=False)(x)
    jax.block_until_ready(y_fast)
    assert bool(jnp.all(y_fast == ref))

    print("KERNEL_OK")
</pallas_src>

<mosaic_0001>
module attributes {stable_mosaic.version = 11 : i64} {
  func.func @_copy_kernel(%arg0: i32, %arg1: memref<8x256xf32, #tpu.memory_space<vmem>>, %arg2: memref<8x256xf32, #tpu.memory_space<vmem>>) attributes {dimension_semantics = [#tpu.dimension_semantics<parallel>], iteration_bounds = array<i64: 1>, scalar_prefetch = 0 : i64, scratch_operands = 0 : i64, tpu.core_type = #tpu.core_type<tc>, window_params = [{transform_indices = @transform_0, window_bounds = array<i64: 8, 256>}, {transform_indices = @transform_1, window_bounds = array<i64: 8, 256>}]} {
    %c0 = arith.constant 0 : index
    %c0_0 = arith.constant 0 : index
    %0 = vector.load %arg1[%c0, %c0_0] : memref<8x256xf32, #tpu.memory_space<vmem>>, vector<8x256xf32>
    %c0_1 = arith.constant 0 : index
    %c0_2 = arith.constant 0 : index
    %1 = vector.load %arg2[%c0_1, %c0_2] : memref<8x256xf32, #tpu.memory_space<vmem>>, vector<8x256xf32>
    tpu.vector_store %arg2[%c0_1, %c0_2], %0 {strides = array<i32>} : memref<8x256xf32, #tpu.memory_space<vmem>>, vector<8x256xf32>,
    return
  }
  func.func @transform_0(%arg0: i32) -> (i32, i32) {
    %c0_i32 = arith.constant 0 : i32
    %c0_i32_0 = arith.constant 0 : i32
    return %arg0, %c0_i32 : i32, i32
  }
  func.func @transform_1(%arg0: i32) -> (i32, i32) {
    %c0_i32 = arith.constant 0 : i32
    %c0_i32_0 = arith.constant 0 : i32
    return %arg0, %c0_i32 : i32, i32
  }
}

</mosaic_0001>

<llo_original>
// kernel: tpu_custom_call.1
$region0: #{tpu_custom_call.1}
  #allocation0 [shape = 'u32[]', space=smem, size = 0x4, offset = 0x4, fixed_abs, tag = 'smem constant byte address 0x4 - core index']
  #allocation1 [shape = 'u32[144,128]{1,0:T(1,128)}', space=vmem, size = 0x12000, scoped, tag = 'internal scratch']
  %s0 = inlined_call_operand.hbm [shape: f32[8,256], index: 0, kind: input, shape index: {}]
  %s1 = inlined_call_operand.hbm [shape: f32[8,256], index: 1, kind: output, shape index: {}]
  %s2 = sld [smem:[#allocation0]]
  $region18: #{tpu_custom_call.1} parent=0
    _
  %s4 = ssub.s32 1, %s2
  %s5 = scalar_select 0, %s4, %s2
  $region1: #{tpu_custom_call.1} parent=0
    #allocation2 [shape = 'u8[8192]{0}', space=vmem, size = 0x2000, scoped, tag = 'input window, operand 0, single buffered']
    #allocation3 [shape = 's32[1]{0}', space=sflag, size = 0x4, scoped, tag = 'scoped memory for tpu_custom_call.1']
    #allocation4 [shape = 's32[1]{0}', space=sflag, size = 0x4, scoped, tag = 'scoped memory for tpu_custom_call.1']
    #allocation5 [shape = 'u8[8192]{0}', space=vmem, size = 0x2000, scoped, tag = 'output window, operand 0, single buffered']
    %6 = vsyncpa [#allocation3], 0
    %7 = vsyncpa [#allocation4], 0
    // Predicated region
    $region2: #{tpu_custom_call.1} parent=1 // pred_check
      _
    $region3: #{tpu_custom_call.1} parent=1 // pred_check_branch
      %9 = sbr.rel (0) target = $region5
    $region4: #{tpu_custom_call.1} parent=1 // pred_region
      %s11 = ssub.s32 256, 256
      %12 = vsyncadd [#allocation3], %s11
      %s14 = sshll.u32 [#allocation2], 4
      %s15 = int_to_ptr.vmem [resolvable:$true] %s14
      %17 = dma.hbm_to_vmem [thread:$0]  %s0, 256, %s15, [#allocation3]
    $region5: #{tpu_custom_call.1} parent=1 // pred_fallthru
      _
    // Predicated region
    $region6: #{tpu_custom_call.1} parent=1 // pred_check
      _
    $region7: #{tpu_custom_call.1} parent=1 // pred_check_branch
      %19 = sbr.rel (0) target = $region9
    $region8: #{tpu_custom_call.1} parent=1 // pred_region
      %20 = dma.done [#allocation3], 256
    $region9: #{tpu_custom_call.1} parent=1 // pred_fallthru
      _
    %v21 = vld [vmem:[#allocation2] sm:$0xff]
    %v22 = vld [vmem:[#allocation2 + $0x8] sm:$0xff]
    %23 = vst [vmem:[#allocation5] sm:$0xff] %v21
    %24 = vst [vmem:[#allocation5 + $0x8] sm:$0xff] %v22
    // Predicated region
    $region10: #{tpu_custom_call.1} parent=1 // pred_check
      _
    $region11: #{tpu_custom_call.1} parent=1 // pred_check_branch
      %26 = sbr.rel (0) target = $region13
    $region12: #{tpu_custom_call.1} parent=1 // pred_region
      %s28 = ssub.s32 256, 256
      %29 = vsyncadd [#allocation4], %s28
      %s31 = sshll.u32 [#allocation5], 4
      %s32 = int_to_ptr.vmem [resolvable:$true] %s31
      %34 = dma.vmem_to_hbm [thread:$0]  %s32, 256, %s1, [#allocation4]
    $region13: #{tpu_custom_call.1} parent=1 // pred_fallthru
      _
    // Predicated region
    $region14: #{tpu_custom_call.1} parent=1 // pred_check
      _
    $region15: #{tpu_custom_call.1} parent=1 // pred_check_branch
      %36 = sbr.rel (0) target = $region17
    $region16: #{tpu_custom_call.1} parent=1 // pred_region
      %37 = dma.done [#allocation4], 256
    $region17: #{tpu_custom_call.1} parent=1 // pred_fallthru
      _
    %38 = vsyncpa [#allocation3], 1
    %39 = vsyncpa [#allocation4], 1

</llo_original>
